<compile_context>
chip_gen: v5e
topology: v5e:2x2
jax: 0.10.0
libtpu: 0.0.40
codegen_flags: <defaults>
</compile_context>

<pallas_src>
import functools
import math

import jax
import jax.numpy as jnp
from jax.experimental import pallas as pl
from jax.experimental.pallas import tpu as pltpu

_PI = math.pi
_EPS = 1e-4  # `eps` from the reference module (branch selection constant)


# ---------------------------------------------------------------------------
# In-kernel math helpers (only ops guaranteed to lower on Mosaic TPU).
# ---------------------------------------------------------------------------
def _atan_pos(t):
    """atan(t) for t >= 0, Cephes atanf-style minimax (float32 accuracy)."""
    big = t > 1.0
    z = jnp.where(big, pl.reciprocal(jnp.maximum(t, 1e-30), approx=True), t)
    mid = z > 0.41421356237309503                                 # tan(pi/8)
    w = jnp.where(mid, (z - 1.0) * pl.reciprocal(z + 1.0, approx=True), z)
    ww = w * w
    p = ((((8.05374449538e-2 * ww - 1.38776856032e-1) * ww
           + 1.99777106478e-1) * ww - 3.33329491539e-1) * ww * w + w)
    at = jnp.where(mid, p + (_PI / 4.0), p)
    at = jnp.where(big, (_PI / 2.0) - at, at)
    return at


def _acos(x):
    """acos(x) for x in [-1, 1] via acos(x) = 2*atan(sqrt((1-x)/(1+x)))."""
    # TODO(synk): jnp.arccos has no guaranteed Mosaic lowering; implemented
    # explicitly with sqrt / EUP-reciprocal / minimax-atan (float32-accurate).
    t = jnp.sqrt(jnp.maximum(1.0 - x, 0.0) *
                 pl.reciprocal(jnp.maximum(1.0 + x, 1e-30), approx=True))
    res = 2.0 * _atan_pos(t)
    return jnp.where(x <= -1.0, jnp.float32(_PI), res)


def _pow(x, p):
    """x**p for x >= 0 and trace-time constant p > 0."""
    if abs(p - 1.0) < 1e-12:
        return x
    if abs(p - 0.5) < 1e-12:
        return jnp.sqrt(x)
    if abs(p - 2.0) < 1e-12:
        return x * x
    return jnp.where(x > 0.0, jnp.exp(p * jnp.log(jnp.maximum(x, 1e-30))), 0.0)


def _round_up(v, mult):
    return (v + mult - 1) // mult * mult


def _pick_tb(batch):
    """Batch tile: split in two when large enough so both v7x TCs get work."""
    if batch >= 32 and batch % 16 == 0:
        return batch // 2
    return batch


def _vmem_budget():
    """Generation-aware scoped-VMEM request (bytes)."""
    cap = 64 * 1024 * 1024          # conservative default: v7x per-TC physical
    try:
        cap = int(pltpu.get_tpu_info().vmem_capacity_bytes)
    except Exception:
        pass
    # v5e/v6e: 128 MiB physical -> ask for ~64 MiB scoped.
    # v7x:      64 MiB physical -> cap the request at ~48 MiB.
    limit = max(min(cap - 16 * 1024 * 1024, 64 * 1024 * 1024), 16 * 1024 * 1024)
    return cap, limit


# ---------------------------------------------------------------------------
# Pallas kernel.
#   grid = (num_b_tiles, num_k_tiles)   (batch "parallel", reduction "arbitrary")
#   inputs : x (tb, tk) f32 (cast to bf16 in-kernel), w_emb (D, tk) bf16,
#            w_fc (Cp, D) f32 (resident), targets (tb, 1) int32 (resident).
#   scratch: emb accumulator (tb, D) f32.
# ---------------------------------------------------------------------------
def spa_softmax_kernel(x_ref, wemb_ref, wfc_ref, tgt_ref, out_ref, cos_ref,
                       acc_ref, *, scale, m, n):
    k = pl.program_id(1)

    @pl.when(k == 0)
    def _init():
        acc_ref[...] = jnp.zeros_like(acc_ref)

    # Partial embedding matmul for this K tile: (tb, tk) @ (D, tk)^T on the MXU,
    # bf16 inputs (x cast on the VPU from the f32 stream) with f32 accumulation.
    acc_ref[...] += jax.lax.dot_general(
        x_ref[...].astype(jnp.bfloat16), wemb_ref[...],
        (((1,), (1,)), ((), ())),
        preferred_element_type=jnp.float32)

    @pl.when(k == pl.num_programs(1) - 1)
    def _epilogue():
        emb = acc_ref[...]                                   # (tb, D)  f32
        tgt = tgt_ref[...]                                   # (tb, 1)  int32

        # F.normalize(dim=1): v / max(||v||, 1e-12) == v * rsqrt(max(||v||^2,1e-24))
        emb_n = emb * jax.lax.rsqrt(
            jnp.maximum(jnp.sum(emb * emb, axis=1, keepdims=True), 1e-24))

        cp = out_ref.shape[1]
        cc_max = min(cp, 512)      # class-dim slab: bounds epilogue VMEM on v7x
        for c0 in range(0, cp, cc_max):
            cc = min(cc_max, cp - c0)
            w_c = wfc_ref[c0:c0 + cc, :].astype(jnp.float32)          # (cc, D)
            w_n = w_c * jax.lax.rsqrt(
                jnp.maximum(jnp.sum(w_c * w_c, axis=1, keepdims=True), 1e-24))

            # cos_theta = emb_n @ w_n.T, clamped to [-1, 1].  Zero-padded
            # classifier rows give cos = 0 (sliced off in the wrapper).
            cos = jax.lax.dot_general(emb_n, w_n, (((1,), (1,)), ((), ())),
                                      preferred_element_type=jnp.float32)
            cos = jnp.clip(cos, -1.0, 1.0)
            theta = jnp.clip(_acos(cos) * (1.0 / _PI), 0.0, 1.0)

            # Trace-time branch structure mirrors the PyTorch module exactly.
            if n > 1.0 + _EPS or n < 1.0 - _EPS:
                theta_1 = _pow(theta, n)
            else:
                theta_1 = theta

            if (m > _EPS) and (m < n - _EPS):
                col = c0 + jax.lax.broadcasted_iota(jnp.int32, cos.shape, 1)
                theta_2 = _pow(theta, m)
                theta_3 = jnp.where(col == tgt, theta_2, theta_1)
                out = (1.0 - theta_3) * scale
            else:
                out = (1.0 - theta_1) * scale

            out_ref[:, c0:c0 + cc] = out.astype(out_ref.dtype)
            cos_ref[:, c0:c0 + cc] = cos.astype(cos_ref.dtype)


# ---------------------------------------------------------------------------
# One-time parameter preparation (do NOT call this per forward):
#   * casts w_emb to bf16 (persistent; no per-call cast / extra HBM traffic)
#   * zero-pads F to a multiple of the chosen K tile, C to a multiple of 128
#   * sizes the K tile from the generation's VMEM budget minus resident buffers
# ---------------------------------------------------------------------------
def prepare_params(w_emb, w_fc, *, batch_size, tk=None):
    D, Fin = w_emb.shape
    C = w_fc.shape[0]
    Cp = _round_up(C, 128)
    tb = _pick_tb(batch_size)

    _, vmem_limit = _vmem_budget()
    # Resident VMEM: accumulator + both lane-padded f32 outputs (x2 buffers,
    # conservative) + resident classifier + slack for Mosaic internal scratch.
    resident = (tb * D * 4
                + 2 * 2 * tb * Cp * 4
                + 2 * Cp * D * 4
                + (1 << 20))
    stream_budget = max(vmem_limit - resident, 2 << 20)
    per_tk = 2 * (4 * tb + 2 * D)      # double-buffered f32 x tile + bf16 w_emb tile
    if tk is None:
        tk = max(128, (stream_budget // per_tk) // 128 * 128)
    tk = int(min(tk, _round_up(Fin, 128)))
    Fp = _round_up(Fin, tk)

    w_emb_p = jnp.zeros((D, Fp), jnp.bfloat16).at[:, :Fin].set(
        w_emb.astype(jnp.bfloat16))
    w_fc_p = jnp.zeros((Cp, D), jnp.float32).at[:C, :].set(
        w_fc.astype(jnp.float32))

    return dict(w_emb=w_emb_p, w_fc=w_fc_p, D=D, Fin=Fin, Fp=Fp, C=C, Cp=Cp,
                tk=tk, vmem_limit=int(vmem_limit))


def spa_softmax_forward(x, targets, params, *, scale=16.0, m=0.5, n=1.0):
    B = x.shape[0]
    D, Fin, Fp = params["D"], params["Fin"], params["Fp"]
    C, Cp, tk = params["C"], params["Cp"], params["tk"]

    x_flat = x.reshape(B, -1).astype(jnp.float32)
    assert x_flat.shape[1] == Fin
    if Fp != Fin:
        x_flat = jnp.pad(x_flat, ((0, 0), (0, Fp - Fin)))

    tb = _pick_tb(B)
    nb = B // tb
    nk = Fp // tk

    # Targets as a (B, 1) int32 block; constant k index_map keeps it resident.
    tgt2 = targets.reshape(B, 1).astype(jnp.int32)

    # Advisory cost estimate so XLA schedules surrounding ops sensibly.
    cost = pl.CostEstimate(
        flops=2 * B * D * Fp + 2 * B * D * Cp,
        transcendentals=8 * B * Cp,
        bytes_accessed=(4 * B * Fp + 2 * D * Fp
                        + 4 * (Cp * D + 2 * B * Cp + B)))

    kernel = functools.partial(spa_softmax_kernel,
                               scale=float(scale), m=float(m), n=float(n))

    out_p, cos_p = pl.pallas_call(
        kernel,
        out_shape=(jax.ShapeDtypeStruct((B, Cp), jnp.float32),
                   jax.ShapeDtypeStruct((B, Cp), jnp.float32)),
        grid_spec=pltpu.PrefetchScalarGridSpec(
            num_scalar_prefetch=0,
            grid=(nb, nk),
            in_specs=[
                pl.BlockSpec((tb, tk), lambda b, k: (b, k)),    # x     (f32 stream)
                pl.BlockSpec((D, tk), lambda b, k: (0, k)),     # w_emb (bf16 stream)
                pl.BlockSpec((Cp, D), lambda b, k: (0, 0)),     # w_fc  (resident)
                pl.BlockSpec((tb, 1), lambda b, k: (b, 0)),     # targets (resident)
            ],
            out_specs=(pl.BlockSpec((tb, Cp), lambda b, k: (b, 0)),
                       pl.BlockSpec((tb, Cp), lambda b, k: (b, 0))),
            scratch_shapes=[pltpu.VMEM((tb, D), jnp.float32)]),   # emb accumulator
        compiler_params=pltpu.CompilerParams(
            dimension_semantics=("parallel", "arbitrary"),
            vmem_limit_bytes=params["vmem_limit"]),
        cost_estimate=cost,
    )(x_flat, params["w_emb"], params["w_fc"], tgt2)

    return out_p[:, :C], cos_p[:, :C]


# ---------------------------------------------------------------------------
# Pure-JAX reference (same math, using jnp.arccos) for a sanity check.
# ---------------------------------------------------------------------------
def reference_forward(x, w_emb, w_fc, targets, *, scale=16.0, m=0.5, n=1.0):
    B = x.shape[0]
    xf = x.reshape(B, -1).astype(jnp.float32)
    emb = xf @ w_emb.T
    emb = emb / jnp.maximum(jnp.linalg.norm(emb, axis=1, keepdims=True), 1e-12)
    w = w_fc / jnp.maximum(jnp.linalg.norm(w_fc, axis=1, keepdims=True), 1e-12)
    cos = jnp.clip(emb @ w.T, -1.0, 1.0)
    theta = jnp.clip(jnp.arccos(cos) / jnp.pi, 0.0, 1.0)
    theta_1 = theta if (1.0 - _EPS <= n <= 1.0 + _EPS) else theta ** n
    if (m > _EPS) and (m < n - _EPS):
        one_hot = jax.nn.one_hot(targets, cos.shape[1], dtype=jnp.float32)
        theta_2 = theta ** m
        theta_3 = theta_1 * (1.0 - one_hot) + theta_2 * one_hot
        out = (1.0 - theta_3) * scale
    else:
        out = (1.0 - theta_1) * scale
    return out, cos


if __name__ == "__main__":
    key = jax.random.PRNGKey(0)
    k1, k2, k3, k4 = jax.random.split(key, 4)

    # ---- test 1: module-default small shapes; tk=512 -> 2 pipelined K steps.
    B, Cin, H, W = 2, 4, 16, 16          # NCHW input to embedding_net
    D = 32                               # embedding size -> sum(output_shape)
    C = 10                               # output_size
    Fin = Cin * H * W                    # 1024

    x = jax.random.normal(k1, (B, Cin, H, W), dtype=jnp.float32)
    w_emb = jax.random.normal(k2, (D, Fin), dtype=jnp.float32) / jnp.sqrt(Fin)
    w_fc = jax.random.normal(k3, (C, D), dtype=jnp.float32) / jnp.sqrt(D)
    targets = jax.random.randint(k4, (B,), 0, C, dtype=jnp.int32)

    params = prepare_params(w_emb, w_fc, batch_size=B, tk=512)   # one-time prep
    out, cos_theta = spa_softmax_forward(x, targets, params,
                                         scale=16.0, m=0.5, n=1.0)
    jax.block_until_ready((out, cos_theta))

    ref_out, ref_cos = reference_forward(x, w_emb, w_fc, targets,
                                         scale=16.0, m=0.5, n=1.0)
    assert out.shape == (B, C) and cos_theta.shape == (B, C)
    # bf16 matmul streams -> relaxed tolerances vs the f32 reference.
    assert jnp.allclose(cos_theta, ref_cos, atol=3e-2, rtol=3e-2)
    assert jnp.allclose(out, ref_out, atol=2.5e-1, rtol=3e-2)

    # ---- test 2: non-128-divisible F (padding path) + multi-chunk epilogue.
    k5, k6, k7, k8 = jax.random.split(jax.random.PRNGKey(1), 4)
    B2, Cin2, H2, W2 = 4, 4, 15, 15      # F = 900 (not a multiple of 128)
    D2, C2 = 32, 600                     # Cp = 640 -> two class slabs (512+128)
    Fin2 = Cin2 * H2 * W2

    x2 = jax.random.normal(k5, (B2, Cin2, H2, W2), dtype=jnp.float32)
    w_emb2 = jax.random.normal(k6, (D2, Fin2), dtype=jnp.float32) / jnp.sqrt(Fin2)
    w_fc2 = jax.random.normal(k7, (C2, D2), dtype=jnp.float32) / jnp.sqrt(D2)
    targets2 = jax.random.randint(k8, (B2,), 0, C2, dtype=jnp.int32)

    params2 = prepare_params(w_emb2, w_fc2, batch_size=B2)       # auto tk / F pad
    out2, cos2 = spa_softmax_forward(x2, targets2, params2,
                                     scale=16.0, m=0.5, n=1.0)
    jax.block_until_ready((out2, cos2))

    ref_out2, ref_cos2 = reference_forward(x2, w_emb2, w_fc2, targets2,
                                           scale=16.0, m=0.5, n=1.0)
    assert out2.shape == (B2, C2) and cos2.shape == (B2, C2)
    assert jnp.allclose(cos2, ref_cos2, atol=3e-2, rtol=3e-2)
    assert jnp.allclose(out2, ref_out2, atol=2.5e-1, rtol=3e-2)

    print("KERNEL_OK")
</pallas_src>

<mosaic_0001>
module attributes {stable_mosaic.version = 11 : i64} {
  func.func @spa_softmax_kernel(%arg0: i32, %arg1: i32, %arg2: memref<2x512xf32, #tpu.memory_space<vmem>>, %arg3: memref<32x512xbf16, #tpu.memory_space<vmem>>, %arg4: memref<128x32xf32, #tpu.memory_space<vmem>>, %arg5: memref<2x1xi32, #tpu.memory_space<vmem>>, %arg6: memref<2x128xf32, #tpu.memory_space<vmem>>, %arg7: memref<2x128xf32, #tpu.memory_space<vmem>>, %arg8: memref<2x32xf32, #tpu.memory_space<vmem>>) attributes {dimension_semantics = [#tpu.dimension_semantics<parallel>, #tpu.dimension_semantics<arbitrary>], iteration_bounds = array<i64: 1, 2>, scalar_prefetch = 0 : i64, scratch_operands = 1 : i64, tpu.core_type = #tpu.core_type<tc>, window_params = [{transform_indices = @transform_0, window_bounds = array<i64: 2, 512>}, {transform_indices = @transform_1, window_bounds = array<i64: 32, 512>}, {pipeline_mode = #tpu.pipeline_mode<synchronous>, transform_indices = @transform_2, window_bounds = array<i64: 128, 32>}, {transform_indices = @transform_3, window_bounds = array<i64: 2, 1>}, {transform_indices = @transform_4, window_bounds = array<i64: 2, 128>}, {transform_indices = @transform_5, window_bounds = array<i64: 2, 128>}]} {
    %c0_i32 = arith.constant 0 : i32
    %0 = arith.cmpi eq, %arg1, %c0_i32 : i32
    %1 = arith.extui %0 : i1 to i32
    %c0_i32_0 = arith.constant 0 : i32
    %2 = arith.cmpi ne, %1, %c0_i32_0 : i32
    scf.if %2 {
      %cst_9 = arith.constant 0.000000e+00 : f32
      %13 = vector.broadcast %cst_9 : f32 to vector<2x32xf32>
      %c0_10 = arith.constant 0 : index
      %c0_11 = arith.constant 0 : index
      %14 = vector.load %arg8[%c0_10, %c0_11] : memref<2x32xf32, #tpu.memory_space<vmem>>, vector<2x32xf32>
      tpu.vector_store %arg8[%c0_10, %c0_11], %13 {strides = array<i32>} : memref<2x32xf32, #tpu.memory_space<vmem>>, vector<2x32xf32>,
    } else {
    }
    %c0 = arith.constant 0 : index
    %c0_1 = arith.constant 0 : index
    %3 = vector.load %arg8[%c0, %c0_1] : memref<2x32xf32, #tpu.memory_space<vmem>>, vector<2x32xf32>
    %c0_2 = arith.constant 0 : index
    %c0_3 = arith.constant 0 : index
    %4 = vector.load %arg2[%c0_2, %c0_3] : memref<2x512xf32, #tpu.memory_space<vmem>>, vector<2x512xf32>
    %5 = arith.truncf %4 : vector<2x512xf32> to vector<2x512xbf16>
    %c0_4 = arith.constant 0 : index
    %c0_5 = arith.constant 0 : index
    %6 = vector.load %arg3[%c0_4, %c0_5] : memref<32x512xbf16, #tpu.memory_space<vmem>>, vector<32x512xbf16>
    %cst = arith.constant dense<0.000000e+00> : vector<2x32xf32>
    %7 = tpu.matmul %5, %6, %cst {dimension_numbers = #tpu.dot_dimension_numbers<[1], [1], [0], [0], [0, 0, 1, 0], [], []>} : vector<2x512xbf16>, vector<32x512xbf16>, vector<2x32xf32> -> vector<2x32xf32>
    %8 = arith.addf %3, %7 : vector<2x32xf32>
    %c0_6 = arith.constant 0 : index
    %c0_7 = arith.constant 0 : index
    %9 = vector.load %arg8[%c0_6, %c0_7] : memref<2x32xf32, #tpu.memory_space<vmem>>, vector<2x32xf32>
    tpu.vector_store %arg8[%c0_6, %c0_7], %8 {strides = array<i32>} : memref<2x32xf32, #tpu.memory_space<vmem>>, vector<2x32xf32>,
    %c1_i32 = arith.constant 1 : i32
    %10 = arith.cmpi eq, %arg1, %c1_i32 : i32
    %11 = arith.extui %10 : i1 to i32
    %c0_i32_8 = arith.constant 0 : i32
    %12 = arith.cmpi ne, %11, %c0_i32_8 : i32
    scf.if %12 {
      %c0_9 = arith.constant 0 : index
      %c0_10 = arith.constant 0 : index
      %13 = vector.load %arg8[%c0_9, %c0_10] : memref<2x32xf32, #tpu.memory_space<vmem>>, vector<2x32xf32>
      %c0_11 = arith.constant 0 : index
      %c0_12 = arith.constant 0 : index
      %14 = vector.load %arg5[%c0_11, %c0_12] : memref<2x1xi32, #tpu.memory_space<vmem>>, vector<2x1xi32>
      %15 = arith.mulf %13, %13 : vector<2x32xf32>
      %cst_13 = arith.constant dense<0.000000e+00> : vector<2xf32>
      %16 = vector.multi_reduction <add>, %15, %cst_13 [1] : vector<2x32xf32> to vector<2xf32>
      %17 = vector.shape_cast %16 : vector<2xf32> to vector<2x1xf32>
      %cst_14 = arith.constant 1.000000e-24 : f32
      %18 = vector.broadcast %cst_14 : f32 to vector<2x1xf32>
      %19 = arith.maximumf %17, %18 : vector<2x1xf32>
      %20 = math.rsqrt %19 : vector<2x1xf32>
      %21 = vector.broadcast %20 : vector<2x1xf32> to vector<2x32xf32>
      %22 = arith.mulf %13, %21 : vector<2x32xf32>
      %c0_15 = arith.constant 0 : index
      %c0_16 = arith.constant 0 : index
      %23 = vector.load %arg4[%c0_15, %c0_16] : memref<128x32xf32, #tpu.memory_space<vmem>>, vector<128x32xf32>
      %24 = arith.mulf %23, %23 : vector<128x32xf32>
      %cst_17 = arith.constant dense<0.000000e+00> : vector<128xf32>
      %25 = vector.multi_reduction <add>, %24, %cst_17 [1] : vector<128x32xf32> to vector<128xf32>
      %26 = vector.shape_cast %25 : vector<128xf32> to vector<128x1xf32>
      %cst_18 = arith.constant 1.000000e-24 : f32
      %27 = vector.broadcast %cst_18 : f32 to vector<128x1xf32>
      %28 = arith.maximumf %26, %27 : vector<128x1xf32>
      %29 = math.rsqrt %28 : vector<128x1xf32>
      %30 = vector.broadcast %29 : vector<128x1xf32> to vector<128x32xf32>
      %31 = arith.mulf %23, %30 : vector<128x32xf32>
      %cst_19 = arith.constant dense<0.000000e+00> : vector<2x128xf32>
      %32 = tpu.matmul %22, %31, %cst_19 {dimension_numbers = #tpu.dot_dimension_numbers<[1], [1], [0], [0], [0, 0, 1, 0], [], []>} : vector<2x32xf32>, vector<128x32xf32>, vector<2x128xf32> -> vector<2x128xf32>
      %cst_20 = arith.constant -1.000000e+00 : f32
      %cst_21 = arith.constant 1.000000e+00 : f32
      %33 = vector.broadcast %cst_20 : f32 to vector<2x128xf32>
      %34 = arith.maximumf %33, %32 : vector<2x128xf32>
      %35 = vector.broadcast %cst_21 : f32 to vector<2x128xf32>
      %36 = arith.minimumf %35, %34 : vector<2x128xf32>
      %cst_22 = arith.constant 1.000000e+00 : f32
      %37 = vector.broadcast %cst_22 : f32 to vector<2x128xf32>
      %38 = arith.subf %37, %36 : vector<2x128xf32>
      %cst_23 = arith.constant 0.000000e+00 : f32
      %39 = vector.broadcast %cst_23 : f32 to vector<2x128xf32>
      %40 = arith.maximumf %38, %39 : vector<2x128xf32>
      %cst_24 = arith.constant 1.000000e+00 : f32
      %41 = vector.broadcast %cst_24 : f32 to vector<2x128xf32>
      %42 = arith.addf %41, %36 : vector<2x128xf32>
      %cst_25 = arith.constant 1.000000e-30 : f32
      %43 = vector.broadcast %cst_25 : f32 to vector<2x128xf32>
      %44 = arith.maximumf %42, %43 : vector<2x128xf32>
      %45 = tpu.reciprocal %44 {approx = true} : vector<2x128xf32> -> vector<2x128xf32>
      %46 = arith.mulf %40, %45 : vector<2x128xf32>
      %47 = math.sqrt %46 : vector<2x128xf32>
      %cst_26 = arith.constant 1.000000e+00 : f32
      %48 = vector.broadcast %cst_26 : f32 to vector<2x128xf32>
      %49 = arith.cmpf ogt, %47, %48 : vector<2x128xf32>
      %cst_27 = arith.constant 1.000000e-30 : f32
      %50 = vector.broadcast %cst_27 : f32 to vector<2x128xf32>
      %51 = arith.maximumf %47, %50 : vector<2x128xf32>
      %52 = tpu.reciprocal %51 {approx = true} : vector<2x128xf32> -> vector<2x128xf32>
      %53 = arith.select %49, %52, %47 : vector<2x128xi1>, vector<2x128xf32>
      %cst_28 = arith.constant 0.414213568 : f32
      %54 = vector.broadcast %cst_28 : f32 to vector<2x128xf32>
      %55 = arith.cmpf ogt, %53, %54 : vector<2x128xf32>
      %cst_29 = arith.constant 1.000000e+00 : f32
      %56 = vector.broadcast %cst_29 : f32 to vector<2x128xf32>
      %57 = arith.subf %53, %56 : vector<2x128xf32>
      %cst_30 = arith.constant 1.000000e+00 : f32
      %58 = vector.broadcast %cst_30 : f32 to vector<2x128xf32>
      %59 = arith.addf %53, %58 : vector<2x128xf32>
      %60 = tpu.reciprocal %59 {approx = true} : vector<2x128xf32> -> vector<2x128xf32>
      %61 = arith.mulf %57, %60 : vector<2x128xf32>
      %62 = arith.select %55, %61, %53 : vector<2x128xi1>, vector<2x128xf32>
      %63 = arith.mulf %62, %62 : vector<2x128xf32>
      %cst_31 = arith.constant 0.0805374458 : f32
      %64 = vector.broadcast %cst_31 : f32 to vector<2x128xf32>
      %65 = arith.mulf %64, %63 : vector<2x128xf32>
      %cst_32 = arith.constant 0.138776854 : f32
      %66 = vector.broadcast %cst_32 : f32 to vector<2x128xf32>
      %67 = arith.subf %65, %66 : vector<2x128xf32>
      %68 = arith.mulf %67, %63 : vector<2x128xf32>
      %cst_33 = arith.constant 0.199777111 : f32
      %69 = vector.broadcast %cst_33 : f32 to vector<2x128xf32>
      %70 = arith.addf %68, %69 : vector<2x128xf32>
      %71 = arith.mulf %70, %63 : vector<2x128xf32>
      %cst_34 = arith.constant 0.333329499 : f32
      %72 = vector.broadcast %cst_34 : f32 to vector<2x128xf32>
      %73 = arith.subf %71, %72 : vector<2x128xf32>
      %74 = arith.mulf %73, %63 : vector<2x128xf32>
      %75 = arith.mulf %74, %62 : vector<2x128xf32>
      %76 = arith.addf %75, %62 : vector<2x128xf32>
      %cst_35 = arith.constant 0.785398185 : f32
      %77 = vector.broadcast %cst_35 : f32 to vector<2x128xf32>
      %78 = arith.addf %76, %77 : vector<2x128xf32>
      %79 = arith.select %55, %78, %76 : vector<2x128xi1>, vector<2x128xf32>
      %cst_36 = arith.constant 1.57079637 : f32
      %80 = vector.broadcast %cst_36 : f32 to vector<2x128xf32>
      %81 = arith.subf %80, %79 : vector<2x128xf32>
      %82 = arith.select %49, %81, %79 : vector<2x128xi1>, vector<2x128xf32>
      %cst_37 = arith.constant 2.000000e+00 : f32
      %83 = vector.broadcast %cst_37 : f32 to vector<2x128xf32>
      %84 = arith.mulf %83, %82 : vector<2x128xf32>
      %cst_38 = arith.constant -1.000000e+00 : f32
      %85 = vector.broadcast %cst_38 : f32 to vector<2x128xf32>
      %86 = arith.cmpf ole, %36, %85 : vector<2x128xf32>
      %cst_39 = arith.constant 3.14159274 : f32
      %87 = vector.broadcast %cst_39 : f32 to vector<2x128xf32>
      %88 = arith.select %86, %87, %84 : vector<2x128xi1>, vector<2x128xf32>
      %cst_40 = arith.constant 0.318309873 : f32
      %89 = vector.broadcast %cst_40 : f32 to vector<2x128xf32>
      %90 = arith.mulf %88, %89 : vector<2x128xf32>
      %cst_41 = arith.constant 0.000000e+00 : f32
      %cst_42 = arith.constant 1.000000e+00 : f32
      %91 = vector.broadcast %cst_41 : f32 to vector<2x128xf32>
      %92 = arith.maximumf %91, %90 : vector<2x128xf32>
      %93 = vector.broadcast %cst_42 : f32 to vector<2x128xf32>
      %94 = arith.minimumf %93, %92 : vector<2x128xf32>
      %95 = tpu.iota {dimensions = array<i32: 1>} : vector<2x128xi32>
      %c0_i32_43 = arith.constant 0 : i32
      %96 = vector.broadcast %c0_i32_43 : i32 to vector<2x128xi32>
      %97 = arith.addi %96, %95 : vector<2x128xi32>
      %98 = math.sqrt %94 : vector<2x128xf32>
      %99 = vector.broadcast %14 : vector<2x1xi32> to vector<2x128xi32>
      %100 = arith.cmpi eq, %97, %99 : vector<2x128xi32>
      %101 = arith.select %100, %98, %94 : vector<2x128xi1>, vector<2x128xf32>
      %cst_44 = arith.constant 1.000000e+00 : f32
      %102 = vector.broadcast %cst_44 : f32 to vector<2x128xf32>
      %103 = arith.subf %102, %101 : vector<2x128xf32>
      %cst_45 = arith.constant 1.600000e+01 : f32
      %104 = vector.broadcast %cst_45 : f32 to vector<2x128xf32>
      %105 = arith.mulf %103, %104 : vector<2x128xf32>
      %c0_46 = arith.constant 0 : index
      %c0_47 = arith.constant 0 : index
      %106 = vector.load %arg6[%c0_46, %c0_47] : memref<2x128xf32, #tpu.memory_space<vmem>>, vector<2x128xf32>
      tpu.vector_store %arg6[%c0_46, %c0_47], %105 {strides = array<i32>} : memref<2x128xf32, #tpu.memory_space<vmem>>, vector<2x128xf32>,
      %c0_48 = arith.constant 0 : index
      %c0_49 = arith.constant 0 : index
      %107 = vector.load %arg7[%c0_48, %c0_49] : memref<2x128xf32, #tpu.memory_space<vmem>>, vector<2x128xf32>
      tpu.vector_store %arg7[%c0_48, %c0_49], %36 {strides = array<i32>} : memref<2x128xf32, #tpu.memory_space<vmem>>, vector<2x128xf32>,
    } else {
    }
    return
  }
  func.func @transform_0(%arg0: i32, %arg1: i32) -> (i32, i32) {
    %c0_i32 = arith.constant 0 : i32
    return %arg0, %arg1 : i32, i32
  }
  func.func @transform_1(%arg0: i32, %arg1: i32) -> (i32, i32) {
    %c0_i32 = arith.constant 0 : i32
    %c0_i32_0 = arith.constant 0 : i32
    return %c0_i32, %arg1 : i32, i32
  }
  func.func @transform_2(%arg0: i32, %arg1: i32) -> (i32, i32) {
    %c0_i32 = arith.constant 0 : i32
    %c0_i32_0 = arith.constant 0 : i32
    %c0_i32_1 = arith.constant 0 : i32
    return %c0_i32, %c0_i32_0 : i32, i32
  }
  func.func @transform_3(%arg0: i32, %arg1: i32) -> (i32, i32) {
    %c0_i32 = arith.constant 0 : i32
    %c0_i32_0 = arith.constant 0 : i32
    return %arg0, %c0_i32 : i32, i32
  }
  func.func @transform_4(%arg0: i32, %arg1: i32) -> (i32, i32) {
    %c0_i32 = arith.constant 0 : i32
    %c0_i32_0 = arith.constant 0 : i32
    return %arg0, %c0_i32 : i32, i32
  }
  func.func @transform_5(%arg0: i32, %arg1: i32) -> (i32, i32) {
    %c0_i32 = arith.constant 0 : i32
    %c0_i32_0 = arith.constant 0 : i32
    return %arg0, %c0_i32 : i32, i32
  }
}

</mosaic_0001>

<llo_original>
// kernel: tpu_custom_call.1
$region0: #{tpu_custom_call.1}
  #allocation0 [shape = 'u32[]', space=smem, size = 0x4, offset = 0x4, fixed_abs, tag = 'smem constant byte address 0x4 - core index']
  #allocation1 [shape = 'u32[72,128]{1,0:T(1,128)}', space=vmem, size = 0x9000, scoped, tag = 'internal scratch']
  #allocation2 [shape = 'f32[2,32]{1,0:T(2,128)}', space=vmem, size = 0x400, scoped, tag = 'scratch operand']
  %s0 = inlined_call_operand.vmem [shape: f32[2,1024], index: 0, kind: input, shape index: {}]
  %s1 = inlined_call_operand.vmem [shape: bf16[32,1024], index: 1, kind: input, shape index: {}]
  %s2 = inlined_call_operand.vmem [shape: f32[128,32], index: 2, kind: input, shape index: {}]
  %s3 = inlined_call_operand.vmem [shape: s32[2,1], index: 3, kind: input, shape index: {}]
  %s4 = inlined_call_operand.hbm [shape: f32[2,128], index: 4, kind: output, shape index: {0}]
  %s5 = inlined_call_operand.hbm [shape: f32[2,128], index: 5, kind: output, shape index: {1}]
  %6 = xla_tuple %s4, %s5
  %s7 = sld [smem:[#allocation0]]
  $region88: #{tpu_custom_call.1} parent=0
    _
  %s9 = ssub.s32 1, %s7
  %s10 = scalar_select 0, %s9, %s7
  $region1: #{tpu_custom_call.1} parent=0
    #allocation3 [shape = 'u8[65536]{0}', space=vmem, size = 0x10000, scoped, tag = 'input window, operand 1']
    #allocation4 [shape = 'u8[1024]{0}', space=vmem, size = 0x400, scoped, tag = 'output window, operand 0, single buffered']
    #allocation5 [shape = 's32[2]{0}', space=sflag, size = 0x8, scoped, tag = 'scoped memory for tpu_custom_call.1']
    #allocation6 [shape = 'u8[1024]{0}', space=vmem, size = 0x400, scoped, tag = 'output window, operand 1, single buffered']
    #allocation7 [shape = 's32[1]{0}', space=sflag, size = 0x4, scoped, tag = 'scoped memory for tpu_custom_call.1']
    %11 = vsyncpa [#allocation5], 0
    %12 = vsyncpa [#allocation7], 0
    loop: start=0, step=1, limit=4
    $region2: #{tpu_custom_call.1} parent=1 // loop_pre_header
      _
    $region3: #{tpu_custom_call.1} parent=1 // loop_header
      %s14 = sphi 0, %s18
      %p15 = scmp.ge.s32.totalorder %s14, 4
      %s21 = sphi 0, %s33
      %s22 = sphi 0, %s29
      %s23 = sphi 0, %s21
      %s24 = sphi 0, %s22
      %s25 = sphi 0, %s23
      %s26 = sphi 0, %s24
      %s38 = sphi 0, %s40
      %s41 = sphi 0, %s38
      %s42 = sphi 0, %s41
      %s58 = sphi 0, %s42
      %s64 = sphi 0, %s66
      %s67 = sphi 0, %s64
      %s68 = sphi 0, %s67
      %s84 = sphi 0, %s68
      %s88 = sphi 0, %s88
      %s90 = sphi 0, %s88
      %s91 = sphi 0, %s90
      %s105 = sphi 0, %s91
      %s111 = sphi 0, %s113
      %s114 = sphi 0, %s111
      %s115 = sphi 0, %s114
      %s131 = sphi 0, %s115
      %s137 = sphi 0, %s139
      %s140 = sphi 0, %s137
      %s141 = sphi 0, %s140
      %s157 = sphi 0, %s141
      %s163 = sphi 0, %s165
      %s166 = sphi 0, %s163
      %s167 = sphi 0, %s166
      %s183 = sphi 0, %s167
    $region4: #{tpu_custom_call.1} parent=1 // loop_header_branch
      %17 = sbr.rel (%p15) target = $region8
    $region5: #{tpu_custom_call.1} parent=1 // loop_body
      %s19 = ssub.s32 %s14, 1
      %s20 = ssub.s32 %s14, 2
      %s27 = sadd.s32 1, %s22
      %p28 = scmp.ge.s32.totalorder %s27, 2
      %s29 = scalar_select %p28, 0, %s27
      %s30 = sadd.s32 1, %s21
      %s31 = scalar_select %p28, %s30, %s21
      %p32 = scmp.ge.s32.totalorder %s31, 1
      %s33 = scalar_select %p32, 0, %s31
      %s34 = ssub.s32 %s21, %s33
      %s35 = ssub.s32 %s22, %s29
      %s36 = sor.u32 %s34, %s35
      %p37 = scmp.eq.s32.totalorder %s36, 0
      %s39 = sadd.s32 %s38, 1
      %s40 = scalar_select %p37, %s38, %s39
      %p43 = pneg %p37
      %p44 = scmp.eq.s32.totalorder %s14, 1
      %p45 = por %p43, %p44
      %p46 = scmp.ne.s32.totalorder %s38, %s41
      %p47 = scmp.eq.s32.totalorder %s14, 0
      %p48 = por %p46, %p47
      %p49 = scmp.ne.s32.totalorder %s38, %s41
      %p50 = scmp.eq.s32.totalorder %s19, 1
      %p51 = por %p49, %p50
      %p52 = scmp.ne.s32.totalorder %s41, %s42
      %p53 = scmp.eq.s32.totalorder %s19, 0
      %p54 = por %p52, %p53
      %p55 = scmp.ne.s32.totalorder %s41, %s42
      %p56 = scmp.eq.s32.totalorder %s20, 1
      %p57 = por %p55, %p56
      %p59 = scmp.ne.s32.totalorder %s42, %s58
      %p60 = scmp.eq.s32.totalorder %s20, 0
      %p61 = por %p59, %p60
      %s62 = ssub.s32 %s22, %s29
      %p63 = scmp.eq.s32.totalorder %s62, 0
      %s65 = sadd.s32 %s64, 1
      %s66 = scalar_select %p63, %s64, %s65
      %p69 = pneg %p63
      %p70 = scmp.eq.s32.totalorder %s14, 1
      %p71 = por %p69, %p70
      %p72 = scmp.ne.s32.totalorder %s64, %s67
      %p73 = scmp.eq.s32.totalorder %s14, 0
      %p74 = por %p72, %p73
      %p75 = scmp.ne.s32.totalorder %s64, %s67
      %p76 = scmp.eq.s32.totalorder %s19, 1
      %p77 = por %p75, %p76
      %p78 = scmp.ne.s32.totalorder %s67, %s68
      %p79 = scmp.eq.s32.totalorder %s19, 0
      %p80 = por %p78, %p79
      %p81 = scmp.ne.s32.totalorder %s67, %s68
      %p82 = scmp.eq.s32.totalorder %s20, 1
      %p83 = por %p81, %p82
      %p85 = scmp.ne.s32.totalorder %s68, %s84
      %p86 = scmp.eq.s32.totalorder %s20, 0
      %p87 = por %p85, %p86
      %s89 = sadd.s32 %s88, 1
      %p92 = scmp.eq.s32.totalorder %s14, 1
      %p93 = scmp.ne.s32.totalorder %s88, %s90
      %p94 = scmp.eq.s32.totalorder %s14, 0
      %p95 = por %p93, %p94
      %p96 = scmp.ne.s32.totalorder %s88, %s90
      %p97 = scmp.eq.s32.totalorder %s19, 1
      %p98 = por %p96, %p97
      %p99 = scmp.ne.s32.totalorder %s90, %s91
      %p100 = scmp.eq.s32.totalorder %s19, 0
      %p101 = por %p99, %p100
      %p102 = scmp.ne.s32.totalorder %s90, %s91
      %p103 = scmp.eq.s32.totalorder %s20, 1
      %p104 = por %p102, %p103
      %p106 = scmp.ne.s32.totalorder %s91, %s105
      %p107 = scmp.eq.s32.totalorder %s20, 0
      %p108 = por %p106, %p107
      %s109 = ssub.s32 %s21, %s33
      %p110 = scmp.eq.s32.totalorder %s109, 0
      %s112 = sadd.s32 %s111, 1
      %s113 = scalar_select %p110, %s111, %s112
      %p116 = pneg %p110
      %p117 = scmp.eq.s32.totalorder %s14, 1
      %p118 = por %p116, %p117
      %p119 = scmp.ne.s32.totalorder %s111, %s114
      %p120 = scmp.eq.s32.totalorder %s14, 0
      %p121 = por %p119, %p120
      %p122 = scmp.ne.s32.totalorder %s111, %s114
      %p123 = scmp.eq.s32.totalorder %s19, 1
      %p124 = por %p122, %p123
      %p125 = scmp.ne.s32.totalorder %s114, %s115
      %p126 = scmp.eq.s32.totalorder %s19, 0
      %p127 = por %p125, %p126
      %p128 = scmp.ne.s32.totalorder %s114, %s115
      %p129 = scmp.eq.s32.totalorder %s20, 1
      %p130 = por %p128, %p129
      %p132 = scmp.ne.s32.totalorder %s115, %s131
      %p133 = scmp.eq.s32.totalorder %s20, 0
      %p134 = por %p132, %p133
      %s135 = ssub.s32 %s21, %s33
      %p136 = scmp.eq.s32.totalorder %s135, 0
      %s138 = sadd.s32 %s137, 1
      %s139 = scalar_select %p136, %s137, %s138
      %p142 = pneg %p136
      %p143 = scmp.eq.s32.totalorder %s14, 1
      %p144 = por %p142, %p143
      %p145 = scmp.ne.s32.totalorder %s137, %s140
      %p146 = scmp.eq.s32.totalorder %s14, 0
      %p147 = por %p145, %p146
      %p148 = scmp.ne.s32.totalorder %s137, %s140
      %p149 = scmp.eq.s32.totalorder %s19, 1
      %p150 = por %p148, %p149
      %p151 = scmp.ne.s32.totalorder %s140, %s141
      %p152 = scmp.eq.s32.totalorder %s19, 0
      %p153 = por %p151, %p152
      %p154 = scmp.ne.s32.totalorder %s140, %s141
      %p155 = scmp.eq.s32.totalorder %s20, 1
      %p156 = por %p154, %p155
      %p158 = scmp.ne.s32.totalorder %s141, %s157
      %p159 = scmp.eq.s32.totalorder %s20, 0
      %p160 = por %p158, %p159
      %s161 = ssub.s32 %s21, %s33
      %p162 = scmp.eq.s32.totalorder %s161, 0
      %s164 = sadd.s32 %s163, 1
      %s165 = scalar_select %p162, %s163, %s164
      %p168 = pneg %p162
      %p169 = scmp.eq.s32.totalorder %s14, 1
      %p170 = por %p168, %p169
      %p171 = scmp.ne.s32.totalorder %s163, %s166
      %p172 = scmp.eq.s32.totalorder %s14, 0
      %p173 = por %p171, %p172
      %p174 = scmp.ne.s32.totalorder %s163, %s166
      %p175 = scmp.eq.s32.totalorder %s19, 1
      %p176 = por %p174, %p175
      %p177 = scmp.ne.s32.totalorder %s166, %s167
      %p178 = scmp.eq.s32.totalorder %s19, 0
      %p179 = por %p177, %p178
      %p180 = scmp.ne.s32.totalorder %s166, %s167
      %p181 = scmp.eq.s32.totalorder %s20, 1
      %p182 = por %p180, %p181
      %p184 = scmp.ne.s32.totalorder %s167, %s183
      %p185 = scmp.eq.s32.totalorder %s20, 0
      %p186 = por %p184, %p185
      %p187 = scmp.le.s32.totalorder 1, %s14
      %p188 = scmp.lt.s32.totalorder %s14, 3
      %p189 = pnand %p187, %p188
      %p190 = pneg %p189
      // Predicated region
      $region9: #{tpu_custom_call.1} parent=5 // pred_check
        _
      $region10: #{tpu_custom_call.1} parent=5 // pred_check_branch
        %192 = sbr.rel (%p189) target = $region12
      $region11: #{tpu_custom_call.1} parent=5 // pred_region
        %s193 = ssub.s32 %s14, 1
        // Predicated region
        $region13: #{tpu_custom_call.1} parent=11 // pred_check
          %p194 = pneg %p101
        $region14: #{tpu_custom_call.1} parent=11 // pred_check_branch
          %196 = sbr.rel (%p194) target = $region16
        $region15: #{tpu_custom_call.1} parent=11 // pred_region
          _
        $region16: #{tpu_custom_call.1} parent=11 // pred_fallthru
          _
        // Predicated region
        $region17: #{tpu_custom_call.1} parent=11 // pred_check
          %p197 = pneg %p127
        $region18: #{tpu_custom_call.1} parent=11 // pred_check_branch
          %199 = sbr.rel (%p197) target = $region20
        $region19: #{tpu_custom_call.1} parent=11 // pred_region
          %p200 = scmp.lt.s32.totalorder %s23, 0
          %s201 = scalar_select %p200, %s23, 0
          %s202 = smul.addr %s201, 2
          %s203 = scalar_lea.vmem %s3, %s202
        $region20: #{tpu_custom_call.1} parent=11 // pred_fallthru
          _
      $region12: #{tpu_custom_call.1} parent=5 // pred_fallthru
        _
      %p204 = scmp.lt.s32.totalorder %s14, 2
      // Predicated region
      $region21: #{tpu_custom_call.1} parent=5 // pred_check
        %p205 = pneg %p204
      $region22: #{tpu_custom_call.1} parent=5 // pred_check_branch
        %207 = sbr.rel (%p205) target = $region24
      $region23: #{tpu_custom_call.1} parent=5 // pred_region
        // Predicated region
        $region25: #{tpu_custom_call.1} parent=23 // pred_check
          %p208 = pneg %p48
        $region26: #{tpu_custom_call.1} parent=23 // pred_check_branch
          %210 = sbr.rel (%p208) target = $region28
        $region27: #{tpu_custom_call.1} parent=23 // pred_region
          %s211 = smul.u32 4, %s22
          %p212 = scmp.lt.s32.totalorder %s21, 0
          %s213 = scalar_select %p212, %s21, 0
          %p214 = scmp.lt.s32.totalorder %s211, 7
          %s215 = scalar_select %p214, %s211, 7
          %s216 = smul.addr %s213, 8
          %s217 = sadd.s32 %s215, %s216
          %s218 = smul.addr %s217, 2
          %s219 = scalar_lea.vmem %s0, %s218
          %s220 = smul.u32 4, %s22
        $region28: #{tpu_custom_call.1} parent=23 // pred_fallthru
          _
        // Predicated region
        $region29: #{tpu_custom_call.1} parent=23 // pred_check
          %p221 = pneg %p74
        $region30: #{tpu_custom_call.1} parent=23 // pred_check_branch
          %223 = sbr.rel (%p221) target = $region32
        $region31: #{tpu_custom_call.1} parent=23 // pred_region
          %s224 = sand.u32 %s64, 1
          %s225 = sand.u32 %s64, 1
          %s226 = smul.addr %s225, 64
          %s227 = scalar_lea.vmem [#allocation3], %s226
          %s228 = smul.u32 4, %s22
          %s229 = smul.addr %s228, 4
          %s230 = scalar_lea.vmem %s1, %s229
          // Predicated region
          $region33: #{tpu_custom_call.1} parent=31 // pred_check
            _
          $region34: #{tpu_custom_call.1} parent=31 // pred_check_branch
            %232 = sbr.rel (0) target = $region36
          $region35: #{tpu_custom_call.1} parent=31 // pred_region
            // Predicated region
            $region37: #{tpu_custom_call.1} parent=35 // pred_check
              _
            $region38: #{tpu_custom_call.1} parent=35 // pred_check_branch
              %234 = sbr.rel (0) target = $region40
            $region39: #{tpu_custom_call.1} parent=35 // pred_region
              loop: start=0, step=1, limit=1
              $region41: #{tpu_custom_call.1} parent=39 // loop_pre_header
                _
              $region42: #{tpu_custom_call.1} parent=39 // loop_header
                %s236 = sphi 0, %s240
                %p237 = scmp.ge.s32.totalorder %s236, 1
                %s241 = sphi %s230, %s230
                %s242 = sphi %s227, %s227
              $region43: #{tpu_custom_call.1} parent=39 // loop_header_branch
                %239 = sbr.rel (%p237) target = $region47
              $region44: #{tpu_custom_call.1} parent=39 // loop_body
                %v243 = vld [vmem:[%s241] sm:$0xff]
                %244 = vst [vmem:[%s242] sm:$0xff] %v243
                %v245 = vld [vmem:[%s241 + $0x8] sm:$0xff]
                %246 = vst [vmem:[%s242 + $0x8] sm:$0xff] %v245
                %v247 = vld [vmem:[%s241 + $0x20] sm:$0xff]
                %248 = vst [vmem:[%s242 + $0x10] sm:$0xff] %v247
                %v249 = vld [vmem:[%s241 + $0x28] sm:$0xff]
                %250 = vst [vmem:[%s242 + $0x18] sm:$0xff] %v249
                %v251 = vld [vmem:[%s241 + $0x40] sm:$0xff]
                %252 = vst [vmem:[%s242 + $0x20] sm:$0xff] %v251
                %v253 = vld [vmem:[%s241 + $0x48] sm:$0xff]
                %254 = vst [vmem:[%s242 + $0x28] sm:$0xff] %v253
                %v255 = vld [vmem:[%s241 + $0x60] sm:$0xff]
                %256 = vst [vmem:[%s242 + $0x30] sm:$0xff] %v255
                %v257 = vld [vmem:[%s241 + $0x68] sm:$0xff]
                %258 = vst [vmem:[%s242 + $0x38] sm:$0xff] %v257
              $region45: #{tpu_custom_call.1} parent=39 // loop_footer
                %s240 = sadd.s32 1, %s236
              $region46: #{tpu_custom_call.1} parent=39 // loop_footer_branch
                %235 = sbr.rel target = $region42
              $region47: #{tpu_custom_call.1} parent=39 // loop_exit
                _
            $region40: #{tpu_custom_call.1} parent=35 // pred_fallthru
              _
            // Predicated region
            $region48: #{tpu_custom_call.1} parent=35 // pred_check
              _
            $region49: #{tpu_custom_call.1} parent=35 // pred_check_branch
              %260 = sbr.rel target = $region51
            $region50: #{tpu_custom_call.1} parent=35 // pred_region
              _
            $region51: #{tpu_custom_call.1} parent=35 // pred_fallthru
              _
          $region36: #{tpu_custom_call.1} parent=31 // pred_fallthru
            _
          %261 = vnop
        $region32: #{tpu_custom_call.1} parent=23 // pred_fallthru
          _
      $region24: #{tpu_custom_call.1} parent=5 // pred_fallthru
        _
      %p262 = scmp.le.s32.totalorder 1, %s14
      %p263 = scmp.lt.s32.totalorder %s14, 3
      %p264 = pnand %p262, %p263
      %p265 = pneg %p264
      // Predicated region
      $region52: #{tpu_custom_call.1} parent=5 // pred_check
        _
      $region53: #{tpu_custom_call.1} parent=5 // pred_check_branch
        %267 = sbr.rel (%p264) target = $region55
      $region54: #{tpu_custom_call.1} parent=5 // pred_region
        %s268 = ssub.s32 %s14, 1
        %s269 = sand.u32 %s67, 1
        %s270 = sand.u32 %s67, 1
        %s271 = smul.addr %s270, 64
        %s272 = scalar_lea.vmem [#allocation3], %s271
        // Predicated region
        $region56: #{tpu_custom_call.1} parent=54 // pred_check
          %p273 = pneg %p80
        $region57: #{tpu_custom_call.1} parent=54 // pred_check_branch
          %275 = sbr.rel (%p273) target = $region59
        $region58: #{tpu_custom_call.1} parent=54 // pred_region
          _
        $region59: #{tpu_custom_call.1} parent=54 // pred_fallthru
          _
        %s276 = smul.u32 4, %s24
        %p277 = scmp.lt.s32.totalorder %s23, 0
        %s278 = scalar_select %p277, %s23, 0
        %p279 = scmp.lt.s32.totalorder %s276, 7
        %s280 = scalar_select %p279, %s276, 7
        %s281 = smul.addr %s278, 8
        %s282 = sadd.s32 %s280, %s281
        %s283 = smul.addr %s282, 2
        %s284 = scalar_lea.vmem %s0, %s283
        %p285 = pneg %p54
        %p286 = pneg %p51
        %s287 = sand.u32 %s67, 1
        %s288 = sand.u32 %s67, 1
        %s289 = smul.addr %s288, 64
        %s290 = scalar_lea.vmem [#allocation3], %s289
        %p291 = pneg %p80
        %p292 = pneg %p77
        %p293 = pneg %p101
        %p294 = pneg %p98
        %p295 = scmp.lt.s32.totalorder %s23, 0
        %s296 = scalar_select %p295, %s23, 0
        %s297 = smul.addr %s296, 2
        %s298 = scalar_lea.vmem %s3, %s297
        %p299 = pneg %p127
        %p300 = pneg %p124
        %p301 = pneg %p153
        %p302 = pneg %p150
        %p303 = pneg %p179
        %p304 = pneg %p176
        %s305 = smul.u32 4, %s24
        %p306 = scmp.lt.s32.totalorder %s23, 0
        %s307 = scalar_select %p306, %s23, 0
        %p308 = scmp.lt.s32.totalorder %s305, 7
        %s309 = scalar_select %p308, %s305, 7
        %s310 = smul.addr %s307, 8
        %s311 = sadd.s32 %s309, %s310
        %s312 = smul.addr %s311, 2
        %s313 = scalar_lea.vmem %s0, %s312
        %s314 = smul.u32 4, %s24
        %s315 = smul.u32 4, %s24
        %p316 = scmp.lt.s32.totalorder %s23, 0
        %s317 = scalar_select %p316, %s23, 0
        %s318 = smul.addr %s317, 2
        %s319 = scalar_lea.vmem %s3, %s318
        %p321 = scmp.eq.s32.totalorder %s24, 0
        // Predicated region
        $region60: #{tpu_custom_call.1} parent=54 // pred_check
          %p322 = pneg %p321
        $region61: #{tpu_custom_call.1} parent=54 // pred_check_branch
          %324 = sbr.rel (%p322) target = $region63
        $region62: #{tpu_custom_call.1} parent=54 // pred_region
          %vm325 = vcmask 254976
          %326 = vst.msk [vmem:[#allocation2] sm:$0x3] %vm325, 0.0
        $region63: #{tpu_custom_call.1} parent=54 // pred_fallthru
          _
        %v327 = vld [vmem:[#allocation2] sm:$0x3]
        %v328 = vld [vmem:[%s313] sm:$0xff]
        %330 = vst [vmem:[#allocation1] ss:$4 sm:$0xff] %v328
        %v331 = vld.sshfl [vmem:[#allocation1] sm:$0xff pattern:$0x73625140]
        %v332 = vld.sshfl [vmem:[#allocation1 + $0x8] sm:$0xff pattern:$0x73625140]
        %v333 = vld.sshfl [vmem:[#allocation1 + $0x10] sm:$0xff pattern:$0x73625140]
        %v334 = vld.sshfl [vmem:[#allocation1 + $0x18] sm:$0xff pattern:$0x73625140]
        %v339 = vpack.c.bf16 %v331, %v331
        %v340 = vpack.c.bf16 %v332, %v332
        %v341 = vpack.c.bf16 %v333, %v333
        %v342 = vpack.c.bf16 %v334, %v334
        %v343 = vld [vmem:[%s272] sm:$0xff]
        %v344 = vld [vmem:[%s272 + $0x8] sm:$0xff]
        %v345 = vld [vmem:[%s272 + $0x10] sm:$0xff]
        %v346 = vld [vmem:[%s272 + $0x18] sm:$0xff]
        %v347 = vld [vmem:[%s272 + $0x20] sm:$0xff]
        %v348 = vld [vmem:[%s272 + $0x28] sm:$0xff]
        %v349 = vld [vmem:[%s272 + $0x30] sm:$0xff]
        %v350 = vld [vmem:[%s272 + $0x38] sm:$0xff]
        %v359 = vunpack.c.l.b16 %v343
        %v360 = vunpack.c.h.b16 %v343
        %v361 = vunpack.c.l.b16 %v344
        %v362 = vunpack.c.h.b16 %v344
        %v363 = vunpack.c.l.b16 %v345
        %v364 = vunpack.c.h.b16 %v345
        %v365 = vunpack.c.l.b16 %v346
        %v366 = vunpack.c.h.b16 %v346
        %v367 = vunpack.c.l.b16 %v347
        %v368 = vunpack.c.h.b16 %v347
        %v369 = vunpack.c.l.b16 %v348
        %v370 = vunpack.c.h.b16 %v348
        %v371 = vunpack.c.l.b16 %v349
        %v372 = vunpack.c.h.b16 %v349
        %v373 = vunpack.c.l.b16 %v350
        %v374 = vunpack.c.h.b16 %v350
        %v375 = vpack.c.b16 %v363, %v359
        %v376 = vpack.c.b16 %v364, %v360
        %v377 = vpack.c.b16 %v365, %v361
        %v378 = vpack.c.b16 %v366, %v362
        %v379 = vpack.c.b16 %v371, %v367
        %v380 = vpack.c.b16 %v372, %v368
        %v381 = vpack.c.b16 %v373, %v369
        %v382 = vpack.c.b16 %v374, %v370
        %391 = vmatpush.bf16.xpose.msra.mxu0 0
        %392 = vmatpush.bf16.xpose.msra.mxu0 0
        %393 = vmatpush.bf16.xpose.msra.mxu0 0
        %394 = vmatpush.bf16.xpose.msra.mxu0 0
        %395 = vmatpush.bf16.xpose.msra.mxu0 0
        %396 = vmatpush.bf16.xpose.msra.mxu0 0
        %397 = vmatpush.bf16.xpose.msra.mxu0 %v379
        %398 = vmatpush.bf16.xpose.msra.mxu0 %v375
        %399 = vmatmul.bf16.gmra.mxu0 %v339
        %v400 = vpop.f32.mrf.mxu0
        %v401 = vadd.f32 0.0, %v400
        %v402 = vpop.f32.mrf.mxu0
        %403 = vdwg.mxu0
        %404 = vmatpush.bf16.xpose.msra.mxu0 0
        %405 = vmatpush.bf16.xpose.msra.mxu0 0
        %406 = vmatpush.bf16.xpose.msra.mxu0 0
        %407 = vmatpush.bf16.xpose.msra.mxu0 0
        %408 = vmatpush.bf16.xpose.msra.mxu0 0
        %409 = vmatpush.bf16.xpose.msra.mxu0 0
        %410 = vmatpush.bf16.xpose.msra.mxu0 %v380
        %411 = vmatpush.bf16.xpose.msra.mxu0 %v376
        %412 = vmatmul.bf16.gmra.mxu0 %v340
        %v413 = vpop.f32.mrf.mxu0
        %v414 = vadd.f32 %v401, %v413
        %v415 = vpop.f32.mrf.mxu0
        %416 = vdwg.mxu0
        %417 = vmatpush.bf16.xpose.msra.mxu0 0
        %418 = vmatpush.bf16.xpose.msra.mxu0 0
        %419 = vmatpush.bf16.xpose.msra.mxu0 0
        %420 = vmatpush.bf16.xpose.msra.mxu0 0
        %421 = vmatpush.bf16.xpose.msra.mxu0 0
        %422 = vmatpush.bf16.xpose.msra.mxu0 0
        %423 = vmatpush.bf16.xpose.msra.mxu0 %v381
        %424 = vmatpush.bf16.xpose.msra.mxu0 %v377
        %425 = vmatmul.bf16.gmra.mxu0 %v341
        %v426 = vpop.f32.mrf.mxu0
        %v427 = vadd.f32 %v414, %v426
        %v428 = vpop.f32.mrf.mxu0
        %429 = vdwg.mxu0
        %430 = vmatpush.bf16.xpose.msra.mxu0 0
        %431 = vmatpush.bf16.xpose.msra.mxu0 0
        %432 = vmatpush.bf16.xpose.msra.mxu0 0
        %433 = vmatpush.bf16.xpose.msra.mxu0 0
        %434 = vmatpush.bf16.xpose.msra.mxu0 0
        %435 = vmatpush.bf16.xpose.msra.mxu0 0
        %436 = vmatpush.bf16.xpose.msra.mxu0 %v382
        %437 = vmatpush.bf16.xpose.msra.mxu0 %v378
        %438 = vmatmul.bf16.gmra.mxu0 %v342
        %v439 = vpop.f32.mrf.mxu0
        %v440 = vadd.f32 %v427, %v439
        %v441 = vpop.f32.mrf.mxu0
        %442 = vdwg.mxu0
        %v443 = vadd.f32 %v327, %v440
        %vm444 = vcmask 254976
        %445 = vst.msk [vmem:[#allocation2] sm:$0x3] %vm444, %v443
        %p446 = scmp.eq.s32.totalorder %s24, 1
        // Predicated region
        $region64: #{tpu_custom_call.1} parent=54 // pred_check
          %p447 = pneg %p446
        $region65: #{tpu_custom_call.1} parent=54 // pred_check_branch
          %449 = sbr.rel (%p447) target = $region67
        $region66: #{tpu_custom_call.1} parent=54 // pred_region
          %v450 = vld [vmem:[#allocation2] sm:$0x3]
          %v451 = vld [vmem:[%s319] sm:$0x3]
          %v452 = vmul.f32 %v450, %v450
          %v453 = vsel %vm444, %v452, 0.0
          %454 = vadd.xlane.f32.xlu0 %v453
          %v455 = vpop.xlane.xlu0 %454
          %v456 = vmax.f32 %v455, 1e-24
          %v457 = vrsqrt.pop %v456
          %v458 = vmul.f32 %v457, %v456
          %v459 = vmul.f32 %v458, %v457
          %v460 = vmul.f32 0.5, %v459
          %v461 = vsub.f32 1.5, %v460
          %v462 = vmul.f32 %v457, %v461
          %vm463 = vweird.f32 %v456
          %vm464 = vweird.f32 %v457
          %vm465 = vmor %vm463, %vm464
          %v466 = vsel %vm465, %v457, %v462
          %v467 = vmul.f32 %v450, %v466
          %v468 = vld [vmem:[%s2] sm:$0xff]
          %v469 = vld [vmem:[%s2 + $0x8] sm:$0xff]
          %v470 = vld [vmem:[%s2 + $0x10] sm:$0xff]
          %v471 = vld [vmem:[%s2 + $0x18] sm:$0xff]
          %v472 = vld [vmem:[%s2 + $0x20] sm:$0xff]
          %v473 = vld [vmem:[%s2 + $0x28] sm:$0xff]
          %v474 = vld [vmem:[%s2 + $0x30] sm:$0xff]
          %v475 = vld [vmem:[%s2 + $0x38] sm:$0xff]
          %v476 = vld [vmem:[%s2 + $0x40] sm:$0xff]
          %v477 = vld [vmem:[%s2 + $0x48] sm:$0xff]
          %v478 = vld [vmem:[%s2 + $0x50] sm:$0xff]
          %v479 = vld [vmem:[%s2 + $0x58] sm:$0xff]
          %v480 = vld [vmem:[%s2 + $0x60] sm:$0xff]
          %v481 = vld [vmem:[%s2 + $0x68] sm:$0xff]
          %v482 = vld [vmem:[%s2 + $0x70] sm:$0xff]
          %v483 = vld [vmem:[%s2 + $0x78] sm:$0xff]
          %v484 = vmul.f32 %v468, %v468
          %v485 = vmul.f32 %v469, %v469
          %v486 = vmul.f32 %v470, %v470
          %v487 = vmul.f32 %v471, %v471
          %v488 = vmul.f32 %v472, %v472
          %v489 = vmul.f32 %v473, %v473
          %v490 = vmul.f32 %v474, %v474
          %v491 = vmul.f32 %v475, %v475
          %v492 = vmul.f32 %v476, %v476
          %v493 = vmul.f32 %v477, %v477
          %v494 = vmul.f32 %v478, %v478
          %v495 = vmul.f32 %v479, %v479
          %v496 = vmul.f32 %v480, %v480
          %v497 = vmul.f32 %v481, %v481
          %v498 = vmul.f32 %v482, %v482
          %v499 = vmul.f32 %v483, %v483
          %vm500 = vcmask 261120
          %v501 = vsel %vm500, %v484, 0.0
          %502 = vadd.xlane.f32.xlu0 %v501
          %v503 = vpop.xlane.xlu0 %502
          %v504 = vsel %vm500, %v485, 0.0
          %505 = vadd.xlane.f32.xlu0 %v504
          %v506 = vpop.xlane.xlu0 %505
          %v507 = vsel %vm500, %v486, 0.0
          %508 = vadd.xlane.f32.xlu0 %v507
          %v509 = vpop.xlane.xlu0 %508
          %v510 = vsel %vm500, %v487, 0.0
          %511 = vadd.xlane.f32.xlu0 %v510
          %v512 = vpop.xlane.xlu0 %511
          %v513 = vsel %vm500, %v488, 0.0
          %514 = vadd.xlane.f32.xlu0 %v513
          %v515 = vpop.xlane.xlu0 %514
          %v516 = vsel %vm500, %v489, 0.0
          %517 = vadd.xlane.f32.xlu0 %v516
          %v518 = vpop.xlane.xlu0 %517
          %v519 = vsel %vm500, %v490, 0.0
          %520 = vadd.xlane.f32.xlu0 %v519
          %v521 = vpop.xlane.xlu0 %520
          %v522 = vsel %vm500, %v491, 0.0
          %523 = vadd.xlane.f32.xlu0 %v522
          %v524 = vpop.xlane.xlu0 %523
          %v525 = vsel %vm500, %v492, 0.0
          %526 = vadd.xlane.f32.xlu0 %v525
          %v527 = vpop.xlane.xlu0 %526
          %v528 = vsel %vm500, %v493, 0.0
          %529 = vadd.xlane.f32.xlu0 %v528
          %v530 = vpop.xlane.xlu0 %529
          %v531 = vsel %vm500, %v494, 0.0
          %532 = vadd.xlane.f32.xlu0 %v531
          %v533 = vpop.xlane.xlu0 %532
          %v534 = vsel %vm500, %v495, 0.0
          %535 = vadd.xlane.f32.xlu0 %v534
          %v536 = vpop.xlane.xlu0 %535
          %v537 = vsel %vm500, %v496, 0.0
          %538 = vadd.xlane.f32.xlu0 %v537
          %v539 = vpop.xlane.xlu0 %538
          %v540 = vsel %vm500, %v497, 0.0
          %541 = vadd.xlane.f32.xlu0 %v540
          %v542 = vpop.xlane.xlu0 %541
          %v543 = vsel %vm500, %v498, 0.0
          %544 = vadd.xlane.f32.xlu0 %v543
          %v545 = vpop.xlane.xlu0 %544
          %v546 = vsel %vm500, %v499, 0.0
          %547 = vadd.xlane.f32.xlu0 %v546
          %v548 = vpop.xlane.xlu0 %547
          %v549 = vmax.f32 %v503, 1e-24
          %v550 = vmax.f32 %v506, 1e-24
          %v551 = vmax.f32 %v509, 1e-24
          %v552 = vmax.f32 %v512, 1e-24
          %v553 = vmax.f32 %v515, 1e-24
          %v554 = vmax.f32 %v518, 1e-24
          %v555 = vmax.f32 %v521, 1e-24
          %v556 = vmax.f32 %v524, 1e-24
          %v557 = vmax.f32 %v527, 1e-24
          %v558 = vmax.f32 %v530, 1e-24
          %v559 = vmax.f32 %v533, 1e-24
          %v560 = vmax.f32 %v536, 1e-24
          %v561 = vmax.f32 %v539, 1e-24
          %v562 = vmax.f32 %v542, 1e-24
          %v563 = vmax.f32 %v545, 1e-24
          %v564 = vmax.f32 %v548, 1e-24
          %v565 = vrsqrt.pop %v549
          %v566 = vmul.f32 %v565, %v549
          %v567 = vmul.f32 %v566, %v565
          %v568 = vmul.f32 0.5, %v567
          %v569 = vsub.f32 1.5, %v568
          %v570 = vmul.f32 %v565, %v569
          %vm571 = vweird.f32 %v549
          %vm572 = vweird.f32 %v565
          %vm573 = vmor %vm571, %vm572
          %v574 = vsel %vm573, %v565, %v570
          %v575 = vrsqrt.pop %v550
          %v576 = vmul.f32 %v575, %v550
          %v577 = vmul.f32 %v576, %v575
          %v578 = vmul.f32 0.5, %v577
          %v579 = vsub.f32 1.5, %v578
          %v580 = vmul.f32 %v575, %v579
          %vm581 = vweird.f32 %v550
          %vm582 = vweird.f32 %v575
          %vm583 = vmor %vm581, %vm582
          %v584 = vsel %vm583, %v575, %v580
          %v585 = vrsqrt.pop %v551
          %v586 = vmul.f32 %v585, %v551
          %v587 = vmul.f32 %v586, %v585
          %v588 = vmul.f32 0.5, %v587
          %v589 = vsub.f32 1.5, %v588
          %v590 = vmul.f32 %v585, %v589
          %vm591 = vweird.f32 %v551
          %vm592 = vweird.f32 %v585
          %vm593 = vmor %vm591, %vm592
          %v594 = vsel %vm593, %v585, %v590
          %v595 = vrsqrt.pop %v552
          %v596 = vmul.f32 %v595, %v552
          %v597 = vmul.f32 %v596, %v595
          %v598 = vmul.f32 0.5, %v597
          %v599 = vsub.f32 1.5, %v598
          %v600 = vmul.f32 %v595, %v599
          %vm601 = vweird.f32 %v552
          %vm602 = vweird.f32 %v595
          %vm603 = vmor %vm601, %vm602
          %v604 = vsel %vm603, %v595, %v600
          %v605 = vrsqrt.pop %v553
          %v606 = vmul.f32 %v605, %v553
          %v607 = vmul.f32 %v606, %v605
          %v608 = vmul.f32 0.5, %v607
          %v609 = vsub.f32 1.5, %v608
          %v610 = vmul.f32 %v605, %v609
          %vm611 = vweird.f32 %v553
          %vm612 = vweird.f32 %v605
          %vm613 = vmor %vm611, %vm612
          %v614 = vsel %vm613, %v605, %v610
          %v615 = vrsqrt.pop %v554
          %v616 = vmul.f32 %v615, %v554
          %v617 = vmul.f32 %v616, %v615
          %v618 = vmul.f32 0.5, %v617
          %v619 = vsub.f32 1.5, %v618
          %v620 = vmul.f32 %v615, %v619
          %vm621 = vweird.f32 %v554
          %vm622 = vweird.f32 %v615
          %vm623 = vmor %vm621, %vm622
          %v624 = vsel %vm623, %v615, %v620
          %v625 = vrsqrt.pop %v555
          %v626 = vmul.f32 %v625, %v555
          %v627 = vmul.f32 %v626, %v625
          %v628 = vmul.f32 0.5, %v627
          %v629 = vsub.f32 1.5, %v628
          %v630 = vmul.f32 %v625, %v629
          %vm631 = vweird.f32 %v555
          %vm632 = vweird.f32 %v625
          %vm633 = vmor %vm631, %vm632
          %v634 = vsel %vm633, %v625, %v630
          %v635 = vrsqrt.pop %v556
          %v636 = vmul.f32 %v635, %v556
          %v637 = vmul.f32 %v636, %v635
          %v638 = vmul.f32 0.5, %v637
          %v639 = vsub.f32 1.5, %v638
          %v640 = vmul.f32 %v635, %v639
          %vm641 = vweird.f32 %v556
          %vm642 = vweird.f32 %v635
          %vm643 = vmor %vm641, %vm642
          %v644 = vsel %vm643, %v635, %v640
          %v645 = vrsqrt.pop %v557
          %v646 = vmul.f32 %v645, %v557
          %v647 = vmul.f32 %v646, %v645
          %v648 = vmul.f32 0.5, %v647
          %v649 = vsub.f32 1.5, %v648
          %v650 = vmul.f32 %v645, %v649
          %vm651 = vweird.f32 %v557
          %vm652 = vweird.f32 %v645
          %vm653 = vmor %vm651, %vm652
          %v654 = vsel %vm653, %v645, %v650
          %v655 = vrsqrt.pop %v558
          %v656 = vmul.f32 %v655, %v558
          %v657 = vmul.f32 %v656, %v655
          %v658 = vmul.f32 0.5, %v657
          %v659 = vsub.f32 1.5, %v658
          %v660 = vmul.f32 %v655, %v659
          %vm661 = vweird.f32 %v558
          %vm662 = vweird.f32 %v655
          %vm663 = vmor %vm661, %vm662
          %v664 = vsel %vm663, %v655, %v660
          %v665 = vrsqrt.pop %v559
          %v666 = vmul.f32 %v665, %v559
          %v667 = vmul.f32 %v666, %v665
          %v668 = vmul.f32 0.5, %v667
          %v669 = vsub.f32 1.5, %v668
          %v670 = vmul.f32 %v665, %v669
          %vm671 = vweird.f32 %v559
          %vm672 = vweird.f32 %v665
          %vm673 = vmor %vm671, %vm672
          %v674 = vsel %vm673, %v665, %v670
          %v675 = vrsqrt.pop %v560
          %v676 = vmul.f32 %v675, %v560
          %v677 = vmul.f32 %v676, %v675
          %v678 = vmul.f32 0.5, %v677
          %v679 = vsub.f32 1.5, %v678
          %v680 = vmul.f32 %v675, %v679
          %vm681 = vweird.f32 %v560
          %vm682 = vweird.f32 %v675
          %vm683 = vmor %vm681, %vm682
          %v684 = vsel %vm683, %v675, %v680
          %v685 = vrsqrt.pop %v561
          %v686 = vmul.f32 %v685, %v561
          %v687 = vmul.f32 %v686, %v685
          %v688 = vmul.f32 0.5, %v687
          %v689 = vsub.f32 1.5, %v688
          %v690 = vmul.f32 %v685, %v689
          %vm691 = vweird.f32 %v561
          %vm692 = vweird.f32 %v685
          %vm693 = vmor %vm691, %vm692
          %v694 = vsel %vm693, %v685, %v690
          %v695 = vrsqrt.pop %v562
          %v696 = vmul.f32 %v695, %v562
          %v697 = vmul.f32 %v696, %v695
          %v698 = vmul.f32 0.5, %v697
          %v699 = vsub.f32 1.5, %v698
          %v700 = vmul.f32 %v695, %v699
          %vm701 = vweird.f32 %v562
          %vm702 = vweird.f32 %v695
          %vm703 = vmor %vm701, %vm702
          %v704 = vsel %vm703, %v695, %v700
          %v705 = vrsqrt.pop %v563
          %v706 = vmul.f32 %v705, %v563
          %v707 = vmul.f32 %v706, %v705
          %v708 = vmul.f32 0.5, %v707
          %v709 = vsub.f32 1.5, %v708
          %v710 = vmul.f32 %v705, %v709
          %vm711 = vweird.f32 %v563
          %vm712 = vweird.f32 %v705
          %vm713 = vmor %vm711, %vm712
          %v714 = vsel %vm713, %v705, %v710
          %v715 = vrsqrt.pop %v564
          %v716 = vmul.f32 %v715, %v564
          %v717 = vmul.f32 %v716, %v715
          %v718 = vmul.f32 0.5, %v717
          %v719 = vsub.f32 1.5, %v718
          %v720 = vmul.f32 %v715, %v719
          %vm721 = vweird.f32 %v564
          %vm722 = vweird.f32 %v715
          %vm723 = vmor %vm721, %vm722
          %v724 = vsel %vm723, %v715, %v720
          %v725 = vmul.f32 %v468, %v574
          %v726 = vmul.f32 %v469, %v584
          %v727 = vmul.f32 %v470, %v594
          %v728 = vmul.f32 %v471, %v604
          %v729 = vmul.f32 %v472, %v614
          %v730 = vmul.f32 %v473, %v624
          %v731 = vmul.f32 %v474, %v634
          %v732 = vmul.f32 %v475, %v644
          %v733 = vmul.f32 %v476, %v654
          %v734 = vmul.f32 %v477, %v664
          %v735 = vmul.f32 %v478, %v674
          %v736 = vmul.f32 %v479, %v684
          %v737 = vmul.f32 %v480, %v694
          %v738 = vmul.f32 %v481, %v704
          %v739 = vmul.f32 %v482, %v714
          %v740 = vmul.f32 %v483, %v724
          %v742 = vsel %vm500, %v467, 0
          %v745 = vsel %vm500, %v725, 0
          %v748 = vsel %vm500, %v726, 0
          %v751 = vsel %vm500, %v727, 0
          %v754 = vsel %vm500, %v728, 0
          %v757 = vsel %vm500, %v729, 0
          %v760 = vsel %vm500, %v730, 0
          %v763 = vsel %vm500, %v731, 0
          %v766 = vsel %vm500, %v732, 0
          %v769 = vsel %vm500, %v733, 0
          %v772 = vsel %vm500, %v734, 0
          %v775 = vsel %vm500, %v735, 0
          %v778 = vsel %vm500, %v736, 0
          %v781 = vsel %vm500, %v737, 0
          %v784 = vsel %vm500, %v738, 0
          %v787 = vsel %vm500, %v739, 0
          %v790 = vsel %vm500, %v740, 0
          %792 = vmatpush.xpose.msra.mxu0 %v790
          %793 = vmatpush.xpose.msra.mxu0 %v787
          %794 = vmatpush.xpose.msra.mxu0 %v784
          %795 = vmatpush.xpose.msra.mxu0 %v781
          %796 = vmatpush.xpose.msra.mxu0 %v778
          %797 = vmatpush.xpose.msra.mxu0 %v775
          %798 = vmatpush.xpose.msra.mxu0 %v772
          %799 = vmatpush.xpose.msra.mxu0 %v769
          %800 = vmatpush.xpose.msra.mxu0 %v766
          %801 = vmatpush.xpose.msra.mxu0 %v763
          %802 = vmatpush.xpose.msra.mxu0 %v760
          %803 = vmatpush.xpose.msra.mxu0 %v757
          %804 = vmatpush.xpose.msra.mxu0 %v754
          %805 = vmatpush.xpose.msra.mxu0 %v751
          %806 = vmatpush.xpose.msra.mxu0 %v748
          %807 = vmatpush.xpose.msra.mxu0 %v745
          %808 = vmatmul.f32.gmra.mxu0 %v742
          %v809 = vpop.f32.mrf.mxu0
          %v810 = vadd.f32 0.0, %v809
          %811 = vdwg.mxu0
          %v812 = vmax.f32 %v810, -1.0
          %v813 = vmin.f32 %v812, 1.0
          %v814 = vsub.f32 1.0, %v813
          %v815 = vmax.f32 %v814, 0.0
          %v816 = vadd.f32 %v813, 1.0
          %v817 = vmax.f32 %v816, 1e-30
          %v818 = vrcp.pop %v817
          %v819 = vmul.f32 %v815, %v818
          %v820 = vrsqrt.pop %v819
          %v821 = vmul.f32 %v820, %v819
          %v822 = vmul.f32 %v821, %v820
          %v823 = vmul.f32 0.5, %v822
          %v824 = vsub.f32 1.5, %v823
          %v825 = vmul.f32 %v820, %v824
          %v826 = vmul.f32 %v819, %v825
          %vm827 = vcmp.eq.f32.partialorder %v819, inf
          %v828 = vsel %vm827, %v819, %v826
          %vm829 = vcmp.eq.f32.partialorder %v819, 0.0
          %v830 = vand.u32 %v819, 2147483648
          %v831 = vsel %vm829, %v830, %v828
          %vm832 = vcmp.gt.f32.partialorder %v831, 1.0
          %v833 = vmax.f32 %v831, 1e-30
          %v834 = vrcp.pop %v833
          %v835 = vsel %vm832, %v834, %v831
          %vm836 = vcmp.gt.f32.partialorder %v835, 0.41421357
          %v837 = vsub.f32 %v835, 1.0
          %v838 = vadd.f32 %v835, 1.0
          %v839 = vrcp.pop %v838
          %v840 = vmul.f32 %v837, %v839
          %v841 = vsel %vm836, %v840, %v835
          %v842 = vmul.f32 %v841, %v841
          %v843 = vmul.f32 %v842, 0.080537446
          %v844 = vsub.f32 %v843, 0.13877685
          %v845 = vmul.f32 %v844, %v842
          %v846 = vadd.f32 %v845, 0.19977711
          %v847 = vmul.f32 %v846, %v842
          %v848 = vsub.f32 %v847, 0.3333295
          %v849 = vmul.f32 %v848, %v842
          %v850 = vmul.f32 %v849, %v841
          %v851 = vadd.f32 %v850, %v841
          %v852 = vadd.f32 %v851, 0.7853982
          %v853 = vsel %vm836, %v852, %v851
          %v854 = vsub.f32 1.5707964, %v853
          %v855 = vsel %vm832, %v854, %v853
          %v856 = vmul.f32 %v855, 2.0
          %vm857 = vcmp.le.f32.partialorder %v813, -1.0
          %v858 = vsel %vm857, 3.1415927, %v856
          %v859 = vmul.f32 %v858, 0.31830987
          %v860 = vmax.f32 %v859, 0.0
          %v861 = vmin.f32 %v860, 1.0
          %v862 = vlaneseq
          %v863 = vand.u32 %v862, 127
          %v864 = vrsqrt.pop %v861
          %v865 = vmul.f32 %v864, %v861
          %v866 = vmul.f32 %v865, %v864
          %v867 = vmul.f32 0.5, %v866
          %v868 = vsub.f32 1.5, %v867
          %v869 = vmul.f32 %v864, %v868
          %v870 = vmul.f32 %v861, %v869
          %vm871 = vcmp.eq.f32.partialorder %v861, inf
          %v872 = vsel %vm871, %v861, %v870
          %vm873 = vcmp.eq.f32.partialorder %v861, 0.0
          %v874 = vand.u32 %v861, 2147483648
          %v875 = vsel %vm873, %v874, %v872
          %876 = vset.pattern.permute.xlu0 0
          %877 = vperm.xlu0 %876, %v451
          %v878 = vpop.permute.xlu0 %877
          %vm879 = vcmp.eq.s32.totalorder %v863, %v878
          %v880 = vsel %vm879, %v875, %v861
          %v881 = vsub.f32 1.0, %v880
          %v882 = vmul.f32 %v881, 16.0
          %883 = vst [vmem:[#allocation4] sm:$0x3] %v882
          %884 = vst [vmem:[#allocation6] sm:$0x3] %v813
        $region67: #{tpu_custom_call.1} parent=54 // pred_fallthru
          _
        // Predicated region
        $region68: #{tpu_custom_call.1} parent=54 // pred_check
          %p885 = pneg %p150
        $region69: #{tpu_custom_call.1} parent=54 // pred_check_branch
          %887 = sbr.rel (%p885) target = $region71
        $region70: #{tpu_custom_call.1} parent=54 // pred_region
          %889 = vsyncadd [#allocation5], 0
          %s890 = smul.addr %s23, 2
          %s891 = scalar_lea.hbm %s4, %s890
          %s893 = sshll.u32 [#allocation4], 4
          %s894 = int_to_ptr.vmem [resolvable:$true] %s893
          %s895 = sshll.u32 %s891, 4
          %s896 = int_to_ptr.hbm [resolvable:$true] %s895
          %898 = dma.vmem_to_hbm [thread:$0]  %s894, 32, %s896, [#allocation5]
        $region71: #{tpu_custom_call.1} parent=54 // pred_fallthru
          _
        // Predicated region
        $region72: #{tpu_custom_call.1} parent=54 // pred_check
          %p899 = pneg %p176
        $region73: #{tpu_custom_call.1} parent=54 // pred_check_branch
          %901 = sbr.rel (%p899) target = $region75
        $region74: #{tpu_custom_call.1} parent=54 // pred_region
          %903 = vsyncadd [#allocation7], 0
          %s904 = smul.addr %s23, 2
          %s905 = scalar_lea.hbm %s5, %s904
          %s907 = sshll.u32 [#allocation6], 4
          %s908 = int_to_ptr.vmem [resolvable:$true] %s907
          %s909 = sshll.u32 %s905, 4
          %s910 = int_to_ptr.hbm [resolvable:$true] %s909
          %912 = dma.vmem_to_hbm [thread:$0]  %s908, 32, %s910, [#allocation7]
        $region75: #{tpu_custom_call.1} parent=54 // pred_fallthru
          _
        // Predicated region
        $region76: #{tpu_custom_call.1} parent=54 // pred_check
          %p913 = pneg %p150
        $region77: #{tpu_custom_call.1} parent=54 // pred_check_branch
          %915 = sbr.rel (%p913) target = $region79
        $region78: #{tpu_custom_call.1} parent=54 // pred_region
          %917 = dma.done [#allocation5], 32
        $region79: #{tpu_custom_call.1} parent=54 // pred_fallthru
          _
        // Predicated region
        $region80: #{tpu_custom_call.1} parent=54 // pred_check
          %p918 = pneg %p176
        $region81: #{tpu_custom_call.1} parent=54 // pred_check_branch
          %920 = sbr.rel (%p918) target = $region83
        $region82: #{tpu_custom_call.1} parent=54 // pred_region
          %922 = dma.done [#allocation7], 32
        $region83: #{tpu_custom_call.1} parent=54 // pred_fallthru
          _
      $region55: #{tpu_custom_call.1} parent=5 // pred_fallthru
        _
      %p923 = scmp.le.s32.totalorder 2, %s14
      // Predicated region
      $region84: #{tpu_custom_call.1} parent=5 // pred_check
        %p924 = pneg %p923
      $region85: #{tpu_custom_call.1} parent=5 // pred_check_branch
        %926 = sbr.rel (%p924) target = $region87
      $region86: #{tpu_custom_call.1} parent=5 // pred_region
        %s927 = ssub.s32 %s14, 2
      $region87: #{tpu_custom_call.1} parent=5 // pred_fallthru
        _
    $region6: #{tpu_custom_call.1} parent=1 // loop_footer
      %s18 = sadd.s32 1, %s14
    $region7: #{tpu_custom_call.1} parent=1 // loop_footer_branch
      %13 = sbr.rel target = $region3
    $region8: #{tpu_custom_call.1} parent=1 // loop_exit
      _
    %928 = vsyncpa [#allocation5], 1
    %s929 = scalar_lea.sflag [#allocation5], 1
    %930 = vsyncpa %s929, 1
    %931 = vsyncpa [#allocation7], 1

</llo_original>
